<compile_context>
chip_gen: v6e
topology: v6e:2x2x1
jax: 0.10.0
libtpu: 0.0.40
codegen_flags: <defaults>
</compile_context>

<pallas_src>
import jax
import jax.numpy as jnp
from jax.experimental import pallas as pl
from jax.experimental.pallas import tpu as pltpu


def add_conv1x1_kernel(a_ref, b_ref, w_ref, o_ref):
    # Fused elementwise add (VPU) + matmul (MXU), f32 accumulation.
    x = a_ref[...] + b_ref[...]
    o_ref[...] = jnp.dot(
        x, w_ref[...], preferred_element_type=jnp.float32
    ).astype(o_ref.dtype)


def add_conv2d_1x1(x330, x315, weight):
    """x330, x315: (N, C, H, W) float32; weight: (Cout, C, 1, 1) float32."""
    N, C, H, W = x330.shape
    Cout = weight.shape[0]
    M = N * H * W

    # NCHW -> (M, K) channels-last matrix view.
    def to_mat(x):
        return jnp.transpose(x, (0, 2, 3, 1)).reshape(M, C)

    a = to_mat(x330)
    b = to_mat(x315)
    w = weight.reshape(Cout, C).T  # (K, Cout)

    # Single step, full-array blocks: everything (~2 MiB) lives in VMEM at once,
    # no pipelining needed; Mosaic pads the 49-row dimension internally.
    out = pl.pallas_call(
        add_conv1x1_kernel,
        out_shape=jax.ShapeDtypeStruct((M, Cout), x330.dtype),
        in_specs=[
            pl.BlockSpec((M, C), lambda: (0, 0)),
            pl.BlockSpec((M, C), lambda: (0, 0)),
            pl.BlockSpec((C, Cout), lambda: (0, 0)),
        ],
        out_specs=pl.BlockSpec((M, Cout), lambda: (0, 0)),
        compiler_params=pltpu.CompilerParams(
            vmem_limit_bytes=32 * 1024 * 1024,
        ),
    )(a, b, w)

    # (M, Cout) -> NHWC -> NCHW
    return jnp.transpose(out.reshape(N, H, W, Cout), (0, 3, 1, 2))


if __name__ == "__main__":
    key = jax.random.PRNGKey(0)
    k1, k2, k3 = jax.random.split(key, 3)

    N, C, H, W, Cout = 1, 256, 7, 7, 1536
    x330 = jax.random.normal(k1, (N, C, H, W), dtype=jnp.float32)
    x315 = jax.random.normal(k2, (N, C, H, W), dtype=jnp.float32)
    # Deterministic synthetic Conv2d weight (Cout, Cin, 1, 1), bias=False.
    weight = jax.random.normal(k3, (Cout, C, 1, 1), dtype=jnp.float32) * 0.05

    y = add_conv2d_1x1(x330, x315, weight)
    y = jax.block_until_ready(y)

    # Reference check in plain JAX (same math: add then 1x1 conv).
    xs = x330 + x315
    ref = jnp.einsum("nchw,oc->nohw", xs, weight.reshape(Cout, C))
    assert y.shape == (N, Cout, H, W)
    assert jnp.allclose(y, ref, atol=1e-3, rtol=1e-3)

    print("KERNEL_OK")
</pallas_src>

<mosaic_0001>
module attributes {stable_mosaic.version = 11 : i64} {
  func.func @add_conv1x1_kernel(%arg0: memref<49x256xf32, #tpu.memory_space<vmem>>, %arg1: memref<49x256xf32, #tpu.memory_space<vmem>>, %arg2: memref<256x1536xf32, #tpu.memory_space<vmem>>, %arg3: memref<49x1536xf32, #tpu.memory_space<vmem>>) attributes {dimension_semantics = [], scalar_prefetch = 0 : i64, scratch_operands = 0 : i64, tpu.core_type = #tpu.core_type<tc>} {
    %c0 = arith.constant 0 : index
    %c0_0 = arith.constant 0 : index
    %0 = vector.load %arg0[%c0, %c0_0] : memref<49x256xf32, #tpu.memory_space<vmem>>, vector<49x256xf32>
    %c0_1 = arith.constant 0 : index
    %c0_2 = arith.constant 0 : index
    %1 = vector.load %arg1[%c0_1, %c0_2] : memref<49x256xf32, #tpu.memory_space<vmem>>, vector<49x256xf32>
    %2 = arith.addf %0, %1 : vector<49x256xf32>
    %c0_3 = arith.constant 0 : index
    %c0_4 = arith.constant 0 : index
    %3 = vector.load %arg2[%c0_3, %c0_4] : memref<256x1536xf32, #tpu.memory_space<vmem>>, vector<256x1536xf32>
    %cst = arith.constant dense<0.000000e+00> : vector<49x1536xf32>
    %4 = tpu.matmul %2, %3, %cst {dimension_numbers = #tpu.dot_dimension_numbers<[1], [0], [0], [1], [0, 0, 1, 1], [], []>} : vector<49x256xf32>, vector<256x1536xf32>, vector<49x1536xf32> -> vector<49x1536xf32>
    %c0_5 = arith.constant 0 : index
    %c0_6 = arith.constant 0 : index
    %5 = vector.load %arg3[%c0_5, %c0_6] : memref<49x1536xf32, #tpu.memory_space<vmem>>, vector<49x1536xf32>
    tpu.vector_store %arg3[%c0_5, %c0_6], %4 {strides = array<i32>} : memref<49x1536xf32, #tpu.memory_space<vmem>>, vector<49x1536xf32>,
    return
  }
}

</mosaic_0001>

<llo_original>
// kernel: tpu_custom_call.1
$region0: #{tpu_custom_call.1}
  #allocation0 [shape = 'u32[]', space=smem, size = 0x4, offset = 0x4, fixed_abs, tag = 'smem constant byte address 0x4 - core index']
  #allocation1 [shape = 'u32[144,128]{1,0:T(1,128)}', space=vmem, size = 0x12000, scoped, tag = 'internal scratch']
  %s0 = inlined_call_operand.hbm [shape: f32[49,256], index: 0, kind: input, shape index: {}]
  %s1 = inlined_call_operand.hbm [shape: f32[49,256], index: 1, kind: input, shape index: {}]
  %s2 = inlined_call_operand.hbm [shape: f32[256,1536], index: 2, kind: input, shape index: {}]
  %s3 = inlined_call_operand.hbm [shape: f32[49,1536], index: 3, kind: output, shape index: {}]
  %s4 = sld [smem:[#allocation0]]
  $region34: #{tpu_custom_call.1} parent=0
    _
  %s6 = ssub.s32 1, %s4
  %s7 = scalar_select 0, %s6, %s4
  $region1: #{tpu_custom_call.1} parent=0
    #allocation2 [shape = 'u8[57344]{0}', space=vmem, size = 0xe000, scoped, tag = 'input window, operand 0, single buffered']
    #allocation3 [shape = 's32[1]{0}', space=sflag, size = 0x4, scoped, tag = 'scoped memory for tpu_custom_call.1']
    #allocation4 [shape = 's32[1]{0}', space=sflag, size = 0x4, scoped, tag = 'scoped memory for tpu_custom_call.1']
    #allocation5 [shape = 'u8[57344]{0}', space=vmem, size = 0xe000, scoped, tag = 'input window, operand 1, single buffered']
    #allocation6 [shape = 's32[1]{0}', space=sflag, size = 0x4, scoped, tag = 'scoped memory for tpu_custom_call.1']
    #allocation7 [shape = 'u8[1572864]{0}', space=vmem, size = 0x180000, scoped, tag = 'input window, operand 2, single buffered']
    #allocation8 [shape = 'u8[344064]{0}', space=vmem, size = 0x54000, scoped, tag = 'output window, operand 0, single buffered']
    %8 = vsyncpa [#allocation3], 0
    %9 = vsyncpa [#allocation6], 0
    %10 = vsyncpa [#allocation4], 0
    // Predicated region
    $region2: #{tpu_custom_call.1} parent=1 // pred_check
      _
    $region3: #{tpu_custom_call.1} parent=1 // pred_check_branch
      %12 = sbr.rel (0) target = $region5
    $region4: #{tpu_custom_call.1} parent=1 // pred_region
      %s14 = ssub.s32 1792, 1792
      %15 = vsyncadd [#allocation3], %s14
      %s16 = sshll.u32 [#allocation2], 4
      %s17 = int_to_ptr.vmem [resolvable:$true] %s16
      %22 = dma.hbm_to_vmem [thread:$0]  %s0, 1792, %s17, [#allocation3], 256, 256, 16
    $region5: #{tpu_custom_call.1} parent=1 // pred_fallthru
      _
    // Predicated region
    $region6: #{tpu_custom_call.1} parent=1 // pred_check
      _
    $region7: #{tpu_custom_call.1} parent=1 // pred_check_branch
      %24 = sbr.rel (0) target = $region9
    $region8: #{tpu_custom_call.1} parent=1 // pred_region
      %s26 = ssub.s32 1792, 1792
      %27 = vsyncadd [#allocation6], %s26
      %s28 = sshll.u32 [#allocation5], 4
      %s29 = int_to_ptr.vmem [resolvable:$true] %s28
      %34 = dma.hbm_to_vmem [thread:$0]  %s1, 1792, %s29, [#allocation6], 256, 256, 16
    $region9: #{tpu_custom_call.1} parent=1 // pred_fallthru
      _
    // Predicated region
    $region10: #{tpu_custom_call.1} parent=1 // pred_check
      _
    $region11: #{tpu_custom_call.1} parent=1 // pred_check_branch
      %36 = sbr.rel (0) target = $region13
    $region12: #{tpu_custom_call.1} parent=1 // pred_region
      %s38 = ssub.s32 49152, 49152
      %39 = vsyncadd [#allocation6], %s38
      %s40 = sshll.u32 [#allocation7], 4
      %s41 = int_to_ptr.vmem [resolvable:$true] %s40
      %46 = dma.hbm_to_vmem [thread:$0]  %s2, 49152, %s41, [#allocation6], 1536, 1536, 96
    $region13: #{tpu_custom_call.1} parent=1 // pred_fallthru
      _
    // Predicated region
    $region14: #{tpu_custom_call.1} parent=1 // pred_check
      _
    $region15: #{tpu_custom_call.1} parent=1 // pred_check_branch
      %48 = sbr.rel (0) target = $region17
    $region16: #{tpu_custom_call.1} parent=1 // pred_region
      %49 = dma.done [#allocation3], 1792
    $region17: #{tpu_custom_call.1} parent=1 // pred_fallthru
      _
    // Predicated region
    $region18: #{tpu_custom_call.1} parent=1 // pred_check
      _
    $region19: #{tpu_custom_call.1} parent=1 // pred_check_branch
      %51 = sbr.rel (0) target = $region21
    $region20: #{tpu_custom_call.1} parent=1 // pred_region
      %52 = dma.done [#allocation6], 1792
    $region21: #{tpu_custom_call.1} parent=1 // pred_fallthru
      _
    // Predicated region
    $region22: #{tpu_custom_call.1} parent=1 // pred_check
      _
    $region23: #{tpu_custom_call.1} parent=1 // pred_check_branch
      %54 = sbr.rel (0) target = $region25
    $region24: #{tpu_custom_call.1} parent=1 // pred_region
      %55 = dma.done [#allocation6], 49152
    $region25: #{tpu_custom_call.1} parent=1 // pred_fallthru
      _
    %v56 = vld [vmem:[#allocation2] sm:$0xff]
    %v57 = vld [vmem:[#allocation2 + $0x8] sm:$0xff]
    %v58 = vld [vmem:[#allocation2 + $0x10] sm:$0xff]
    %v59 = vld [vmem:[#allocation2 + $0x18] sm:$0xff]
    %v60 = vld [vmem:[#allocation2 + $0x20] sm:$0xff]
    %v61 = vld [vmem:[#allocation2 + $0x28] sm:$0xff]
    %v62 = vld [vmem:[#allocation2 + $0x30] sm:$0xff]
    %v63 = vld [vmem:[#allocation2 + $0x38] sm:$0xff]
    %v64 = vld [vmem:[#allocation2 + $0x40] sm:$0xff]
    %v65 = vld [vmem:[#allocation2 + $0x48] sm:$0xff]
    %v66 = vld [vmem:[#allocation2 + $0x50] sm:$0xff]
    %v67 = vld [vmem:[#allocation2 + $0x58] sm:$0xff]
    %v68 = vld [vmem:[#allocation2 + $0x60] sm:$0x1]
    %v69 = vld [vmem:[#allocation2 + $0x68] sm:$0x1]
    %v70 = vld [vmem:[#allocation5] sm:$0xff]
    %v71 = vld [vmem:[#allocation5 + $0x8] sm:$0xff]
    %v72 = vld [vmem:[#allocation5 + $0x10] sm:$0xff]
    %v73 = vld [vmem:[#allocation5 + $0x18] sm:$0xff]
    %v74 = vld [vmem:[#allocation5 + $0x20] sm:$0xff]
    %v75 = vld [vmem:[#allocation5 + $0x28] sm:$0xff]
    %v76 = vld [vmem:[#allocation5 + $0x30] sm:$0xff]
    %v77 = vld [vmem:[#allocation5 + $0x38] sm:$0xff]
    %v78 = vld [vmem:[#allocation5 + $0x40] sm:$0xff]
    %v79 = vld [vmem:[#allocation5 + $0x48] sm:$0xff]
    %v80 = vld [vmem:[#allocation5 + $0x50] sm:$0xff]
    %v81 = vld [vmem:[#allocation5 + $0x58] sm:$0xff]
    %v82 = vld [vmem:[#allocation5 + $0x60] sm:$0x1]
    %v83 = vld [vmem:[#allocation5 + $0x68] sm:$0x1]
    %v84 = vadd.f32 %v56, %v70
    %v85 = vadd.f32 %v57, %v71
    %v86 = vadd.f32 %v58, %v72
    %v87 = vadd.f32 %v59, %v73
    %v88 = vadd.f32 %v60, %v74
    %v89 = vadd.f32 %v61, %v75
    %v90 = vadd.f32 %v62, %v76
    %v91 = vadd.f32 %v63, %v77
    %v92 = vadd.f32 %v64, %v78
    %v93 = vadd.f32 %v65, %v79
    %v94 = vadd.f32 %v66, %v80
    %v95 = vadd.f32 %v67, %v81
    %v96 = vadd.f32 %v68, %v82
    %v97 = vadd.f32 %v69, %v83
    %v98 = vld [vmem:[#allocation7] sm:$0xff]
    %v99 = vld [vmem:[#allocation7 + $0x8] sm:$0xff]
    %v100 = vld [vmem:[#allocation7 + $0x10] sm:$0xff]
    %v101 = vld [vmem:[#allocation7 + $0x18] sm:$0xff]
    %v102 = vld [vmem:[#allocation7 + $0x20] sm:$0xff]
    %v103 = vld [vmem:[#allocation7 + $0x28] sm:$0xff]
    %v104 = vld [vmem:[#allocation7 + $0x30] sm:$0xff]
    %v105 = vld [vmem:[#allocation7 + $0x38] sm:$0xff]
    %v106 = vld [vmem:[#allocation7 + $0x40] sm:$0xff]
    %v107 = vld [vmem:[#allocation7 + $0x48] sm:$0xff]
    %v108 = vld [vmem:[#allocation7 + $0x50] sm:$0xff]
    %v109 = vld [vmem:[#allocation7 + $0x58] sm:$0xff]
    %v110 = vld [vmem:[#allocation7 + $0x60] sm:$0xff]
    %v111 = vld [vmem:[#allocation7 + $0x68] sm:$0xff]
    %v112 = vld [vmem:[#allocation7 + $0x70] sm:$0xff]
    %v113 = vld [vmem:[#allocation7 + $0x78] sm:$0xff]
    %v114 = vld [vmem:[#allocation7 + $0x80] sm:$0xff]
    %v115 = vld [vmem:[#allocation7 + $0x88] sm:$0xff]
    %v116 = vld [vmem:[#allocation7 + $0x90] sm:$0xff]
    %v117 = vld [vmem:[#allocation7 + $0x98] sm:$0xff]
    %v118 = vld [vmem:[#allocation7 + $0xa0] sm:$0xff]
    %v119 = vld [vmem:[#allocation7 + $0xa8] sm:$0xff]
    %v120 = vld [vmem:[#allocation7 + $0xb0] sm:$0xff]
    %v121 = vld [vmem:[#allocation7 + $0xb8] sm:$0xff]
    %v122 = vld [vmem:[#allocation7 + $0xc0] sm:$0xff]
    %v123 = vld [vmem:[#allocation7 + $0xc8] sm:$0xff]
    %v124 = vld [vmem:[#allocation7 + $0xd0] sm:$0xff]
    %v125 = vld [vmem:[#allocation7 + $0xd8] sm:$0xff]
    %v126 = vld [vmem:[#allocation7 + $0xe0] sm:$0xff]
    %v127 = vld [vmem:[#allocation7 + $0xe8] sm:$0xff]
    %v128 = vld [vmem:[#allocation7 + $0xf0] sm:$0xff]
    %v129 = vld [vmem:[#allocation7 + $0xf8] sm:$0xff]
    %v130 = vld [vmem:[#allocation7 + $0x100] sm:$0xff]
    %v131 = vld [vmem:[#allocation7 + $0x108] sm:$0xff]
    %v132 = vld [vmem:[#allocation7 + $0x110] sm:$0xff]
    %v133 = vld [vmem:[#allocation7 + $0x118] sm:$0xff]
    %v134 = vld [vmem:[#allocation7 + $0x120] sm:$0xff]
    %v135 = vld [vmem:[#allocation7 + $0x128] sm:$0xff]
    %v136 = vld [vmem:[#allocation7 + $0x130] sm:$0xff]
    %v137 = vld [vmem:[#allocation7 + $0x138] sm:$0xff]
    %v138 = vld [vmem:[#allocation7 + $0x140] sm:$0xff]
    %v139 = vld [vmem:[#allocation7 + $0x148] sm:$0xff]
    %v140 = vld [vmem:[#allocation7 + $0x150] sm:$0xff]
    %v141 = vld [vmem:[#allocation7 + $0x158] sm:$0xff]
    %v142 = vld [vmem:[#allocation7 + $0x160] sm:$0xff]
    %v143 = vld [vmem:[#allocation7 + $0x168] sm:$0xff]
    %v144 = vld [vmem:[#allocation7 + $0x170] sm:$0xff]
    %v145 = vld [vmem:[#allocation7 + $0x178] sm:$0xff]
    %v146 = vld [vmem:[#allocation7 + $0x180] sm:$0xff]
    %v147 = vld [vmem:[#allocation7 + $0x188] sm:$0xff]
    %v148 = vld [vmem:[#allocation7 + $0x190] sm:$0xff]
    %v149 = vld [vmem:[#allocation7 + $0x198] sm:$0xff]
    %v150 = vld [vmem:[#allocation7 + $0x1a0] sm:$0xff]
    %v151 = vld [vmem:[#allocation7 + $0x1a8] sm:$0xff]
    %v152 = vld [vmem:[#allocation7 + $0x1b0] sm:$0xff]
    %v153 = vld [vmem:[#allocation7 + $0x1b8] sm:$0xff]
    %v154 = vld [vmem:[#allocation7 + $0x1c0] sm:$0xff]
    %v155 = vld [vmem:[#allocation7 + $0x1c8] sm:$0xff]
    %v156 = vld [vmem:[#allocation7 + $0x1d0] sm:$0xff]
    %v157 = vld [vmem:[#allocation7 + $0x1d8] sm:$0xff]
    %v158 = vld [vmem:[#allocation7 + $0x1e0] sm:$0xff]
    %v159 = vld [vmem:[#allocation7 + $0x1e8] sm:$0xff]
    %v160 = vld [vmem:[#allocation7 + $0x1f0] sm:$0xff]
    %v161 = vld [vmem:[#allocation7 + $0x1f8] sm:$0xff]
    %v162 = vld [vmem:[#allocation7 + $0x200] sm:$0xff]
    %v163 = vld [vmem:[#allocation7 + $0x208] sm:$0xff]
    %v164 = vld [vmem:[#allocation7 + $0x210] sm:$0xff]
    %v165 = vld [vmem:[#allocation7 + $0x218] sm:$0xff]
    %v166 = vld [vmem:[#allocation7 + $0x220] sm:$0xff]
    %v167 = vld [vmem:[#allocation7 + $0x228] sm:$0xff]
    %v168 = vld [vmem:[#allocation7 + $0x230] sm:$0xff]
    %v169 = vld [vmem:[#allocation7 + $0x238] sm:$0xff]
    %v170 = vld [vmem:[#allocation7 + $0x240] sm:$0xff]
    %v171 = vld [vmem:[#allocation7 + $0x248] sm:$0xff]
    %v172 = vld [vmem:[#allocation7 + $0x250] sm:$0xff]
    %v173 = vld [vmem:[#allocation7 + $0x258] sm:$0xff]
    %v174 = vld [vmem:[#allocation7 + $0x260] sm:$0xff]
    %v175 = vld [vmem:[#allocation7 + $0x268] sm:$0xff]
    %v176 = vld [vmem:[#allocation7 + $0x270] sm:$0xff]
    %v177 = vld [vmem:[#allocation7 + $0x278] sm:$0xff]
    %v178 = vld [vmem:[#allocation7 + $0x280] sm:$0xff]
    %v179 = vld [vmem:[#allocation7 + $0x288] sm:$0xff]
    %v180 = vld [vmem:[#allocation7 + $0x290] sm:$0xff]
    %v181 = vld [vmem:[#allocation7 + $0x298] sm:$0xff]
    %v182 = vld [vmem:[#allocation7 + $0x2a0] sm:$0xff]
    %v183 = vld [vmem:[#allocation7 + $0x2a8] sm:$0xff]
    %v184 = vld [vmem:[#allocation7 + $0x2b0] sm:$0xff]
    %v185 = vld [vmem:[#allocation7 + $0x2b8] sm:$0xff]
    %v186 = vld [vmem:[#allocation7 + $0x2c0] sm:$0xff]
    %v187 = vld [vmem:[#allocation7 + $0x2c8] sm:$0xff]
    %v188 = vld [vmem:[#allocation7 + $0x2d0] sm:$0xff]
    %v189 = vld [vmem:[#allocation7 + $0x2d8] sm:$0xff]
    %v190 = vld [vmem:[#allocation7 + $0x2e0] sm:$0xff]
    %v191 = vld [vmem:[#allocation7 + $0x2e8] sm:$0xff]
    %v192 = vld [vmem:[#allocation7 + $0x2f0] sm:$0xff]
    %v193 = vld [vmem:[#allocation7 + $0x2f8] sm:$0xff]
    %v194 = vld [vmem:[#allocation7 + $0x300] sm:$0xff]
    %v195 = vld [vmem:[#allocation7 + $0x308] sm:$0xff]
    %v196 = vld [vmem:[#allocation7 + $0x310] sm:$0xff]
    %v197 = vld [vmem:[#allocation7 + $0x318] sm:$0xff]
    %v198 = vld [vmem:[#allocation7 + $0x320] sm:$0xff]
    %v199 = vld [vmem:[#allocation7 + $0x328] sm:$0xff]
    %v200 = vld [vmem:[#allocation7 + $0x330] sm:$0xff]
    %v201 = vld [vmem:[#allocation7 + $0x338] sm:$0xff]
    %v202 = vld [vmem:[#allocation7 + $0x340] sm:$0xff]
    %v203 = vld [vmem:[#allocation7 + $0x348] sm:$0xff]
    %v204 = vld [vmem:[#allocation7 + $0x350] sm:$0xff]
    %v205 = vld [vmem:[#allocation7 + $0x358] sm:$0xff]
    %v206 = vld [vmem:[#allocation7 + $0x360] sm:$0xff]
    %v207 = vld [vmem:[#allocation7 + $0x368] sm:$0xff]
    %v208 = vld [vmem:[#allocation7 + $0x370] sm:$0xff]
    %v209 = vld [vmem:[#allocation7 + $0x378] sm:$0xff]
    %v210 = vld [vmem:[#allocation7 + $0x380] sm:$0xff]
    %v211 = vld [vmem:[#allocation7 + $0x388] sm:$0xff]
    %v212 = vld [vmem:[#allocation7 + $0x390] sm:$0xff]
    %v213 = vld [vmem:[#allocation7 + $0x398] sm:$0xff]
    %v214 = vld [vmem:[#allocation7 + $0x3a0] sm:$0xff]
    %v215 = vld [vmem:[#allocation7 + $0x3a8] sm:$0xff]
    %v216 = vld [vmem:[#allocation7 + $0x3b0] sm:$0xff]
    %v217 = vld [vmem:[#allocation7 + $0x3b8] sm:$0xff]
    %v218 = vld [vmem:[#allocation7 + $0x3c0] sm:$0xff]
    %v219 = vld [vmem:[#allocation7 + $0x3c8] sm:$0xff]
    %v220 = vld [vmem:[#allocation7 + $0x3d0] sm:$0xff]
    %v221 = vld [vmem:[#allocation7 + $0x3d8] sm:$0xff]
    %v222 = vld [vmem:[#allocation7 + $0x3e0] sm:$0xff]
    %v223 = vld [vmem:[#allocation7 + $0x3e8] sm:$0xff]
    %v224 = vld [vmem:[#allocation7 + $0x3f0] sm:$0xff]
    %v225 = vld [vmem:[#allocation7 + $0x3f8] sm:$0xff]
    %v226 = vld [vmem:[#allocation7 + $0x400] sm:$0xff]
    %v227 = vld [vmem:[#allocation7 + $0x408] sm:$0xff]
    %v228 = vld [vmem:[#allocation7 + $0x410] sm:$0xff]
    %v229 = vld [vmem:[#allocation7 + $0x418] sm:$0xff]
    %v230 = vld [vmem:[#allocation7 + $0x420] sm:$0xff]
    %v231 = vld [vmem:[#allocation7 + $0x428] sm:$0xff]
    %v232 = vld [vmem:[#allocation7 + $0x430] sm:$0xff]
    %v233 = vld [vmem:[#allocation7 + $0x438] sm:$0xff]
    %v234 = vld [vmem:[#allocation7 + $0x440] sm:$0xff]
    %v235 = vld [vmem:[#allocation7 + $0x448] sm:$0xff]
    %v236 = vld [vmem:[#allocation7 + $0x450] sm:$0xff]
    %v237 = vld [vmem:[#allocation7 + $0x458] sm:$0xff]
    %v238 = vld [vmem:[#allocation7 + $0x460] sm:$0xff]
    %v239 = vld [vmem:[#allocation7 + $0x468] sm:$0xff]
    %v240 = vld [vmem:[#allocation7 + $0x470] sm:$0xff]
    %v241 = vld [vmem:[#allocation7 + $0x478] sm:$0xff]
    %v242 = vld [vmem:[#allocation7 + $0x480] sm:$0xff]
    %v243 = vld [vmem:[#allocation7 + $0x488] sm:$0xff]
    %v244 = vld [vmem:[#allocation7 + $0x490] sm:$0xff]
    %v245 = vld [vmem:[#allocation7 + $0x498] sm:$0xff]
    %v246 = vld [vmem:[#allocation7 + $0x4a0] sm:$0xff]
    %v247 = vld [vmem:[#allocation7 + $0x4a8] sm:$0xff]
    %v248 = vld [vmem:[#allocation7 + $0x4b0] sm:$0xff]
    %v249 = vld [vmem:[#allocation7 + $0x4b8] sm:$0xff]
    %v250 = vld [vmem:[#allocation7 + $0x4c0] sm:$0xff]
    %v251 = vld [vmem:[#allocation7 + $0x4c8] sm:$0xff]
    %v252 = vld [vmem:[#allocation7 + $0x4d0] sm:$0xff]
    %v253 = vld [vmem:[#allocation7 + $0x4d8] sm:$0xff]
    %v254 = vld [vmem:[#allocation7 + $0x4e0] sm:$0xff]
    %v255 = vld [vmem:[#allocation7 + $0x4e8] sm:$0xff]
    %v256 = vld [vmem:[#allocation7 + $0x4f0] sm:$0xff]
    %v257 = vld [vmem:[#allocation7 + $0x4f8] sm:$0xff]
    %v258 = vld [vmem:[#allocation7 + $0x500] sm:$0xff]
    %v259 = vld [vmem:[#allocation7 + $0x508] sm:$0xff]
    %v260 = vld [vmem:[#allocation7 + $0x510] sm:$0xff]
    %v261 = vld [vmem:[#allocation7 + $0x518] sm:$0xff]
    %v262 = vld [vmem:[#allocation7 + $0x520] sm:$0xff]
    %v263 = vld [vmem:[#allocation7 + $0x528] sm:$0xff]
    %v264 = vld [vmem:[#allocation7 + $0x530] sm:$0xff]
    %v265 = vld [vmem:[#allocation7 + $0x538] sm:$0xff]
    %v266 = vld [vmem:[#allocation7 + $0x540] sm:$0xff]
    %v267 = vld [vmem:[#allocation7 + $0x548] sm:$0xff]
    %v268 = vld [vmem:[#allocation7 + $0x550] sm:$0xff]
    %v269 = vld [vmem:[#allocation7 + $0x558] sm:$0xff]
    %v270 = vld [vmem:[#allocation7 + $0x560] sm:$0xff]
    %v271 = vld [vmem:[#allocation7 + $0x568] sm:$0xff]
    %v272 = vld [vmem:[#allocation7 + $0x570] sm:$0xff]
    %v273 = vld [vmem:[#allocation7 + $0x578] sm:$0xff]
    %v274 = vld [vmem:[#allocation7 + $0x580] sm:$0xff]
    %v275 = vld [vmem:[#allocation7 + $0x588] sm:$0xff]
    %v276 = vld [vmem:[#allocation7 + $0x590] sm:$0xff]
    %v277 = vld [vmem:[#allocation7 + $0x598] sm:$0xff]
    %v278 = vld [vmem:[#allocation7 + $0x5a0] sm:$0xff]
    %v279 = vld [vmem:[#allocation7 + $0x5a8] sm:$0xff]
    %v280 = vld [vmem:[#allocation7 + $0x5b0] sm:$0xff]
    %v281 = vld [vmem:[#allocation7 + $0x5b8] sm:$0xff]
    %v282 = vld [vmem:[#allocation7 + $0x5c0] sm:$0xff]
    %v283 = vld [vmem:[#allocation7 + $0x5c8] sm:$0xff]
    %v284 = vld [vmem:[#allocation7 + $0x5d0] sm:$0xff]
    %v285 = vld [vmem:[#allocation7 + $0x5d8] sm:$0xff]
    %v286 = vld [vmem:[#allocation7 + $0x5e0] sm:$0xff]
    %v287 = vld [vmem:[#allocation7 + $0x5e8] sm:$0xff]
    %v288 = vld [vmem:[#allocation7 + $0x5f0] sm:$0xff]
    %v289 = vld [vmem:[#allocation7 + $0x5f8] sm:$0xff]
    %v290 = vld [vmem:[#allocation7 + $0x600] sm:$0xff]
    %v291 = vld [vmem:[#allocation7 + $0x608] sm:$0xff]
    %v292 = vld [vmem:[#allocation7 + $0x610] sm:$0xff]
    %v293 = vld [vmem:[#allocation7 + $0x618] sm:$0xff]
    %v294 = vld [vmem:[#allocation7 + $0x620] sm:$0xff]
    %v295 = vld [vmem:[#allocation7 + $0x628] sm:$0xff]
    %v296 = vld [vmem:[#allocation7 + $0x630] sm:$0xff]
    %v297 = vld [vmem:[#allocation7 + $0x638] sm:$0xff]
    %v298 = vld [vmem:[#allocation7 + $0x640] sm:$0xff]
    %v299 = vld [vmem:[#allocation7 + $0x648] sm:$0xff]
    %v300 = vld [vmem:[#allocation7 + $0x650] sm:$0xff]
    %v301 = vld [vmem:[#allocation7 + $0x658] sm:$0xff]
    %v302 = vld [vmem:[#allocation7 + $0x660] sm:$0xff]
    %v303 = vld [vmem:[#allocation7 + $0x668] sm:$0xff]
    %v304 = vld [vmem:[#allocation7 + $0x670] sm:$0xff]
    %v305 = vld [vmem:[#allocation7 + $0x678] sm:$0xff]
    %v306 = vld [vmem:[#allocation7 + $0x680] sm:$0xff]
    %v307 = vld [vmem:[#allocation7 + $0x688] sm:$0xff]
    %v308 = vld [vmem:[#allocation7 + $0x690] sm:$0xff]
    %v309 = vld [vmem:[#allocation7 + $0x698] sm:$0xff]
    %v310 = vld [vmem:[#allocation7 + $0x6a0] sm:$0xff]
    %v311 = vld [vmem:[#allocation7 + $0x6a8] sm:$0xff]
    %v312 = vld [vmem:[#allocation7 + $0x6b0] sm:$0xff]
    %v313 = vld [vmem:[#allocation7 + $0x6b8] sm:$0xff]
    %v314 = vld [vmem:[#allocation7 + $0x6c0] sm:$0xff]
    %v315 = vld [vmem:[#allocation7 + $0x6c8] sm:$0xff]
    %v316 = vld [vmem:[#allocation7 + $0x6d0] sm:$0xff]
    %v317 = vld [vmem:[#allocation7 + $0x6d8] sm:$0xff]
    %v318 = vld [vmem:[#allocation7 + $0x6e0] sm:$0xff]
    %v319 = vld [vmem:[#allocation7 + $0x6e8] sm:$0xff]
    %v320 = vld [vmem:[#allocation7 + $0x6f0] sm:$0xff]
    %v321 = vld [vmem:[#allocation7 + $0x6f8] sm:$0xff]
    %v322 = vld [vmem:[#allocation7 + $0x700] sm:$0xff]
    %v323 = vld [vmem:[#allocation7 + $0x708] sm:$0xff]
    %v324 = vld [vmem:[#allocation7 + $0x710] sm:$0xff]
    %v325 = vld [vmem:[#allocation7 + $0x718] sm:$0xff]
    %v326 = vld [vmem:[#allocation7 + $0x720] sm:$0xff]
    %v327 = vld [vmem:[#allocation7 + $0x728] sm:$0xff]
    %v328 = vld [vmem:[#allocation7 + $0x730] sm:$0xff]
    %v329 = vld [vmem:[#allocation7 + $0x738] sm:$0xff]
    %v330 = vld [vmem:[#allocation7 + $0x740] sm:$0xff]
    %v331 = vld [vmem:[#allocation7 + $0x748] sm:$0xff]
    %v332 = vld [vmem:[#allocation7 + $0x750] sm:$0xff]
    %v333 = vld [vmem:[#allocation7 + $0x758] sm:$0xff]
    %v334 = vld [vmem:[#allocation7 + $0x760] sm:$0xff]
    %v335 = vld [vmem:[#allocation7 + $0x768] sm:$0xff]
    %v336 = vld [vmem:[#allocation7 + $0x770] sm:$0xff]
    %v337 = vld [vmem:[#allocation7 + $0x778] sm:$0xff]
    %v338 = vld [vmem:[#allocation7 + $0x780] sm:$0xff]
    %v339 = vld [vmem:[#allocation7 + $0x788] sm:$0xff]
    %v340 = vld [vmem:[#allocation7 + $0x790] sm:$0xff]
    %v341 = vld [vmem:[#allocation7 + $0x798] sm:$0xff]
    %v342 = vld [vmem:[#allocation7 + $0x7a0] sm:$0xff]
    %v343 = vld [vmem:[#allocation7 + $0x7a8] sm:$0xff]
    %v344 = vld [vmem:[#allocation7 + $0x7b0] sm:$0xff]
    %v345 = vld [vmem:[#allocation7 + $0x7b8] sm:$0xff]
    %v346 = vld [vmem:[#allocation7 + $0x7c0] sm:$0xff]
    %v347 = vld [vmem:[#allocation7 + $0x7c8] sm:$0xff]
    %v348 = vld [vmem:[#allocation7 + $0x7d0] sm:$0xff]
    %v349 = vld [vmem:[#allocation7 + $0x7d8] sm:$0xff]
    %v350 = vld [vmem:[#allocation7 + $0x7e0] sm:$0xff]
    %v351 = vld [vmem:[#allocation7 + $0x7e8] sm:$0xff]
    %v352 = vld [vmem:[#allocation7 + $0x7f0] sm:$0xff]
    %v353 = vld [vmem:[#allocation7 + $0x7f8] sm:$0xff]
    %v354 = vld [vmem:[#allocation7 + $0x800] sm:$0xff]
    %v355 = vld [vmem:[#allocation7 + $0x808] sm:$0xff]
    %v356 = vld [vmem:[#allocation7 + $0x810] sm:$0xff]
    %v357 = vld [vmem:[#allocation7 + $0x818] sm:$0xff]
    %v358 = vld [vmem:[#allocation7 + $0x820] sm:$0xff]
    %v359 = vld [vmem:[#allocation7 + $0x828] sm:$0xff]
    %v360 = vld [vmem:[#allocation7 + $0x830] sm:$0xff]
    %v361 = vld [vmem:[#allocation7 + $0x838] sm:$0xff]
    %v362 = vld [vmem:[#allocation7 + $0x840] sm:$0xff]
    %v363 = vld [vmem:[#allocation7 + $0x848] sm:$0xff]
    %v364 = vld [vmem:[#allocation7 + $0x850] sm:$0xff]
    %v365 = vld [vmem:[#allocation7 + $0x858] sm:$0xff]
    %v366 = vld [vmem:[#allocation7 + $0x860] sm:$0xff]
    %v367 = vld [vmem:[#allocation7 + $0x868] sm:$0xff]
    %v368 = vld [vmem:[#allocation7 + $0x870] sm:$0xff]
    %v369 = vld [vmem:[#allocation7 + $0x878] sm:$0xff]
    %v370 = vld [vmem:[#allocation7 + $0x880] sm:$0xff]
    %v371 = vld [vmem:[#allocation7 + $0x888] sm:$0xff]
    %v372 = vld [vmem:[#allocation7 + $0x890] sm:$0xff]
    %v373 = vld [vmem:[#allocation7 + $0x898] sm:$0xff]
    %v374 = vld [vmem:[#allocation7 + $0x8a0] sm:$0xff]
    %v375 = vld [vmem:[#allocation7 + $0x8a8] sm:$0xff]
    %v376 = vld [vmem:[#allocation7 + $0x8b0] sm:$0xff]
    %v377 = vld [vmem:[#allocation7 + $0x8b8] sm:$0xff]
    %v378 = vld [vmem:[#allocation7 + $0x8c0] sm:$0xff]
    %v379 = vld [vmem:[#allocation7 + $0x8c8] sm:$0xff]
    %v380 = vld [vmem:[#allocation7 + $0x8d0] sm:$0xff]
    %v381 = vld [vmem:[#allocation7 + $0x8d8] sm:$0xff]
    %v382 = vld [vmem:[#allocation7 + $0x8e0] sm:$0xff]
    %v383 = vld [vmem:[#allocation7 + $0x8e8] sm:$0xff]
    %v384 = vld [vmem:[#allocation7 + $0x8f0] sm:$0xff]
    %v385 = vld [vmem:[#allocation7 + $0x8f8] sm:$0xff]
    %v386 = vld [vmem:[#allocation7 + $0x900] sm:$0xff]
    %v387 = vld [vmem:[#allocation7 + $0x908] sm:$0xff]
    %v388 = vld [vmem:[#allocation7 + $0x910] sm:$0xff]
    %v389 = vld [vmem:[#allocation7 + $0x918] sm:$0xff]
    %v390 = vld [vmem:[#allocation7 + $0x920] sm:$0xff]
    %v391 = vld [vmem:[#allocation7 + $0x928] sm:$0xff]
    %v392 = vld [vmem:[#allocation7 + $0x930] sm:$0xff]
    %v393 = vld [vmem:[#allocation7 + $0x938] sm:$0xff]
    %v394 = vld [vmem:[#allocation7 + $0x940] sm:$0xff]
    %v395 = vld [vmem:[#allocation7 + $0x948] sm:$0xff]
    %v396 = vld [vmem:[#allocation7 + $0x950] sm:$0xff]
    %v397 = vld [vmem:[#allocation7 + $0x958] sm:$0xff]
    %v398 = vld [vmem:[#allocation7 + $0x960] sm:$0xff]
    %v399 = vld [vmem:[#allocation7 + $0x968] sm:$0xff]
    %v400 = vld [vmem:[#allocation7 + $0x970] sm:$0xff]
    %v401 = vld [vmem:[#allocation7 + $0x978] sm:$0xff]
    %v402 = vld [vmem:[#allocation7 + $0x980] sm:$0xff]
    %v403 = vld [vmem:[#allocation7 + $0x988] sm:$0xff]
    %v404 = vld [vmem:[#allocation7 + $0x990] sm:$0xff]
    %v405 = vld [vmem:[#allocation7 + $0x998] sm:$0xff]
    %v406 = vld [vmem:[#allocation7 + $0x9a0] sm:$0xff]
    %v407 = vld [vmem:[#allocation7 + $0x9a8] sm:$0xff]
    %v408 = vld [vmem:[#allocation7 + $0x9b0] sm:$0xff]
    %v409 = vld [vmem:[#allocation7 + $0x9b8] sm:$0xff]
    %v410 = vld [vmem:[#allocation7 + $0x9c0] sm:$0xff]
    %v411 = vld [vmem:[#allocation7 + $0x9c8] sm:$0xff]
    %v412 = vld [vmem:[#allocation7 + $0x9d0] sm:$0xff]
    %v413 = vld [vmem:[#allocation7 + $0x9d8] sm:$0xff]
    %v414 = vld [vmem:[#allocation7 + $0x9e0] sm:$0xff]
    %v415 = vld [vmem:[#allocation7 + $0x9e8] sm:$0xff]
    %v416 = vld [vmem:[#allocation7 + $0x9f0] sm:$0xff]
    %v417 = vld [vmem:[#allocation7 + $0x9f8] sm:$0xff]
    %v418 = vld [vmem:[#allocation7 + $0xa00] sm:$0xff]
    %v419 = vld [vmem:[#allocation7 + $0xa08] sm:$0xff]
    %v420 = vld [vmem:[#allocation7 + $0xa10] sm:$0xff]
    %v421 = vld [vmem:[#allocation7 + $0xa18] sm:$0xff]
    %v422 = vld [vmem:[#allocation7 + $0xa20] sm:$0xff]
    %v423 = vld [vmem:[#allocation7 + $0xa28] sm:$0xff]
    %v424 = vld [vmem:[#allocation7 + $0xa30] sm:$0xff]
    %v425 = vld [vmem:[#allocation7 + $0xa38] sm:$0xff]
    %v426 = vld [vmem:[#allocation7 + $0xa40] sm:$0xff]
    %v427 = vld [vmem:[#allocation7 + $0xa48] sm:$0xff]
    %v428 = vld [vmem:[#allocation7 + $0xa50] sm:$0xff]
    %v429 = vld [vmem:[#allocation7 + $0xa58] sm:$0xff]
    %v430 = vld [vmem:[#allocation7 + $0xa60] sm:$0xff]
    %v431 = vld [vmem:[#allocation7 + $0xa68] sm:$0xff]
    %v432 = vld [vmem:[#allocation7 + $0xa70] sm:$0xff]
    %v433 = vld [vmem:[#allocation7 + $0xa78] sm:$0xff]
    %v434 = vld [vmem:[#allocation7 + $0xa80] sm:$0xff]
    %v435 = vld [vmem:[#allocation7 + $0xa88] sm:$0xff]
    %v436 = vld [vmem:[#allocation7 + $0xa90] sm:$0xff]
    %v437 = vld [vmem:[#allocation7 + $0xa98] sm:$0xff]
    %v438 = vld [vmem:[#allocation7 + $0xaa0] sm:$0xff]
    %v439 = vld [vmem:[#allocation7 + $0xaa8] sm:$0xff]
    %v440 = vld [vmem:[#allocation7 + $0xab0] sm:$0xff]
    %v441 = vld [vmem:[#allocation7 + $0xab8] sm:$0xff]
    %v442 = vld [vmem:[#allocation7 + $0xac0] sm:$0xff]
    %v443 = vld [vmem:[#allocation7 + $0xac8] sm:$0xff]
    %v444 = vld [vmem:[#allocation7 + $0xad0] sm:$0xff]
    %v445 = vld [vmem:[#allocation7 + $0xad8] sm:$0xff]
    %v446 = vld [vmem:[#allocation7 + $0xae0] sm:$0xff]
    %v447 = vld [vmem:[#allocation7 + $0xae8] sm:$0xff]
    %v448 = vld [vmem:[#allocation7 + $0xaf0] sm:$0xff]
    %v449 = vld [vmem:[#allocation7 + $0xaf8] sm:$0xff]
    %v450 = vld [vmem:[#allocation7 + $0xb00] sm:$0xff]
    %v451 = vld [vmem:[#allocation7 + $0xb08] sm:$0xff]
    %v452 = vld [vmem:[#allocation7 + $0xb10] sm:$0xff]
    %v453 = vld [vmem:[#allocation7 + $0xb18] sm:$0xff]
    %v454 = vld [vmem:[#allocation7 + $0xb20] sm:$0xff]
    %v455 = vld [vmem:[#allocation7 + $0xb28] sm:$0xff]
    %v456 = vld [vmem:[#allocation7 + $0xb30] sm:$0xff]
    %v457 = vld [vmem:[#allocation7 + $0xb38] sm:$0xff]
    %v458 = vld [vmem:[#allocation7 + $0xb40] sm:$0xff]
    %v459 = vld [vmem:[#allocation7 + $0xb48] sm:$0xff]
    %v460 = vld [vmem:[#allocation7 + $0xb50] sm:$0xff]
    %v461 = vld [vmem:[#allocation7 + $0xb58] sm:$0xff]
    %v462 = vld [vmem:[#allocation7 + $0xb60] sm:$0xff]
    %v463 = vld [vmem:[#allocation7 + $0xb68] sm:$0xff]
    %v464 = vld [vmem:[#allocation7 + $0xb70] sm:$0xff]
    %v465 = vld [vmem:[#allocation7 + $0xb78] sm:$0xff]
    %v466 = vld [vmem:[#allocation7 + $0xb80] sm:$0xff]
    %v467 = vld [vmem:[#allocation7 + $0xb88] sm:$0xff]
    %v468 = vld [vmem:[#allocation7 + $0xb90] sm:$0xff]
    %v469 = vld [vmem:[#allocation7 + $0xb98] sm:$0xff]
    %v470 = vld [vmem:[#allocation7 + $0xba0] sm:$0xff]
    %v471 = vld [vmem:[#allocation7 + $0xba8] sm:$0xff]
    %v472 = vld [vmem:[#allocation7 + $0xbb0] sm:$0xff]
    %v473 = vld [vmem:[#allocation7 + $0xbb8] sm:$0xff]
    %v474 = vld [vmem:[#allocation7 + $0xbc0] sm:$0xff]
    %v475 = vld [vmem:[#allocation7 + $0xbc8] sm:$0xff]
    %v476 = vld [vmem:[#allocation7 + $0xbd0] sm:$0xff]
    %v477 = vld [vmem:[#allocation7 + $0xbd8] sm:$0xff]
    %v478 = vld [vmem:[#allocation7 + $0xbe0] sm:$0xff]
    %v479 = vld [vmem:[#allocation7 + $0xbe8] sm:$0xff]
    %v480 = vld [vmem:[#allocation7 + $0xbf0] sm:$0xff]
    %v481 = vld [vmem:[#allocation7 + $0xbf8] sm:$0xff]
    %482 = vmatprep.subr.mxu0 %v279
    %483 = vmatpush1.msra.mxu0 %v278
    %484 = vmatprep.subr.mxu0 %v267
    %485 = vmatpush1.msra.mxu0 %v266
    %486 = vmatprep.subr.mxu0 %v255
    %487 = vmatpush1.msra.mxu0 %v254
    %488 = vmatprep.subr.mxu0 %v243
    %489 = vmatpush1.msra.mxu0 %v242
    %490 = vmatprep.subr.mxu0 %v231
    %491 = vmatpush1.msra.mxu0 %v230
    %492 = vmatprep.subr.mxu0 %v219
    %493 = vmatpush1.msra.mxu0 %v218
    %494 = vmatprep.subr.mxu0 %v207
    %495 = vmatpush1.msra.mxu0 %v206
    %496 = vmatprep.subr.mxu0 %v195
    %497 = vmatpush1.msra.mxu0 %v194
    %498 = vmatprep.subr.mxu0 %v183
    %499 = vmatpush1.msra.mxu0 %v182
    %500 = vmatprep.subr.mxu0 %v171
    %501 = vmatpush1.msra.mxu0 %v170
    %502 = vmatprep.subr.mxu0 %v159
    %503 = vmatpush1.msra.mxu0 %v158
    %504 = vmatprep.subr.mxu0 %v147
    %505 = vmatpush1.msra.mxu0 %v146
    %506 = vmatprep.subr.mxu0 %v135
    %507 = vmatpush1.msra.mxu0 %v134
    %508 = vmatprep.subr.mxu0 %v123
    %509 = vmatpush1.msra.mxu0 %v122
    %510 = vmatprep.subr.mxu0 %v111
    %511 = vmatpush1.msra.mxu0 %v110
    %512 = vmatprep.subr.mxu0 %v99
    %513 = vmatpush1.msra.mxu0 %v98
    %514 = vmatprep.subr.mxu0 %v471
    %515 = vmatpush2.msra.mxu0 %v470
    %516 = vmatprep.subr.mxu0 %v459
    %517 = vmatpush2.msra.mxu0 %v458
    %518 = vmatprep.subr.mxu0 %v447
    %519 = vmatpush2.msra.mxu0 %v446
    %520 = vmatprep.subr.mxu0 %v435
    %521 = vmatpush2.msra.mxu0 %v434
    %522 = vmatprep.subr.mxu0 %v423
    %523 = vmatpush2.msra.mxu0 %v422
    %524 = vmatprep.subr.mxu0 %v411
    %525 = vmatpush2.msra.mxu0 %v410
    %526 = vmatprep.subr.mxu0 %v399
    %527 = vmatpush2.msra.mxu0 %v398
    %528 = vmatprep.subr.mxu0 %v387
    %529 = vmatpush2.msra.mxu0 %v386
    %530 = vmatprep.subr.mxu0 %v375
    %531 = vmatpush2.msra.mxu0 %v374
    %532 = vmatprep.subr.mxu0 %v363
    %533 = vmatpush2.msra.mxu0 %v362
    %534 = vmatprep.subr.mxu0 %v351
    %535 = vmatpush2.msra.mxu0 %v350
    %536 = vmatprep.subr.mxu0 %v339
    %537 = vmatpush2.msra.mxu0 %v338
    %538 = vmatprep.subr.mxu0 %v327
    %539 = vmatpush2.msra.mxu0 %v326
    %540 = vmatprep.subr.mxu0 %v315
    %541 = vmatpush2.msra.mxu0 %v314
    %542 = vmatprep.subr.mxu0 %v303
    %543 = vmatpush2.msra.mxu0 %v302
    %544 = vmatprep.subr.mxu0 %v291
    %545 = vmatpush2.msra.mxu0 %v290
    %546 = vmatprep.mubr.f32.mxu0 %v85
    %547 = vmatmul.mubr.f32.gmra.mxu0 %v84
    %v548 = vpop.f32.mrf.mxu0
    %v549 = vadd.f32 0.0, %v548
    %v550 = vpop.f32.mrf.mxu0
    %v551 = vadd.f32 0.0, %v550
    %552 = vmatprep.mubr.f32.mxu0 %v87
    %553 = vmatmul.mubr.f32.gmra.mxu0 %v86
    %v554 = vpop.f32.mrf.mxu0
    %v555 = vadd.f32 0.0, %v554
    %v556 = vpop.f32.mrf.mxu0
    %v557 = vadd.f32 0.0, %v556
    %558 = vmatprep.mubr.f32.mxu0 %v89
    %559 = vmatmul.mubr.f32.gmra.mxu0 %v88
    %v560 = vpop.f32.mrf.mxu0
    %v561 = vadd.f32 0.0, %v560
    %v562 = vpop.f32.mrf.mxu0
    %v563 = vadd.f32 0.0, %v562
    %564 = vmatprep.mubr.f32.mxu0 %v91
    %565 = vmatmul.mubr.f32.gmra.mxu0 %v90
    %v566 = vpop.f32.mrf.mxu0
    %v567 = vadd.f32 0.0, %v566
    %v568 = vpop.f32.mrf.mxu0
    %v569 = vadd.f32 0.0, %v568
    %570 = vmatprep.mubr.f32.mxu0 %v93
    %571 = vmatmul.mubr.f32.gmra.mxu0 %v92
    %v572 = vpop.f32.mrf.mxu0
    %v573 = vadd.f32 0.0, %v572
    %v574 = vpop.f32.mrf.mxu0
    %v575 = vadd.f32 0.0, %v574
    %576 = vmatprep.mubr.f32.mxu0 %v95
    %577 = vmatmul.mubr.f32.gmra.mxu0 %v94
    %v578 = vpop.f32.mrf.mxu0
    %v579 = vadd.f32 0.0, %v578
    %v580 = vpop.f32.mrf.mxu0
    %v581 = vadd.f32 0.0, %v580
    %582 = vmatprep.mubr.f32.mxu0 %v97
    %583 = vmatmul.mubr.f32.gmra.mxu0 %v96
    %v584 = vpop.f32.mrf.mxu0
    %v585 = vadd.f32 0.0, %v584
    %v586 = vpop.f32.mrf.mxu0
    %v587 = vadd.f32 0.0, %v586
    %588 = vdwg.mxu0
    %589 = vmatprep.subr.mxu0 %v281
    %590 = vmatpush1.msra.mxu0 %v280
    %591 = vmatprep.subr.mxu0 %v269
    %592 = vmatpush1.msra.mxu0 %v268
    %593 = vmatprep.subr.mxu0 %v257
    %594 = vmatpush1.msra.mxu0 %v256
    %595 = vmatprep.subr.mxu0 %v245
    %596 = vmatpush1.msra.mxu0 %v244
    %597 = vmatprep.subr.mxu0 %v233
    %598 = vmatpush1.msra.mxu0 %v232
    %599 = vmatprep.subr.mxu0 %v221
    %600 = vmatpush1.msra.mxu0 %v220
    %601 = vmatprep.subr.mxu0 %v209
    %602 = vmatpush1.msra.mxu0 %v208
    %603 = vmatprep.subr.mxu0 %v197
    %604 = vmatpush1.msra.mxu0 %v196
    %605 = vmatprep.subr.mxu0 %v185
    %606 = vmatpush1.msra.mxu0 %v184
    %607 = vmatprep.subr.mxu0 %v173
    %608 = vmatpush1.msra.mxu0 %v172
    %609 = vmatprep.subr.mxu0 %v161
    %610 = vmatpush1.msra.mxu0 %v160
    %611 = vmatprep.subr.mxu0 %v149
    %612 = vmatpush1.msra.mxu0 %v148
    %613 = vmatprep.subr.mxu0 %v137
    %614 = vmatpush1.msra.mxu0 %v136
    %615 = vmatprep.subr.mxu0 %v125
    %616 = vmatpush1.msra.mxu0 %v124
    %617 = vmatprep.subr.mxu0 %v113
    %618 = vmatpush1.msra.mxu0 %v112
    %619 = vmatprep.subr.mxu0 %v101
    %620 = vmatpush1.msra.mxu0 %v100
    %621 = vmatprep.subr.mxu0 %v473
    %622 = vmatpush2.msra.mxu0 %v472
    %623 = vmatprep.subr.mxu0 %v461
    %624 = vmatpush2.msra.mxu0 %v460
    %625 = vmatprep.subr.mxu0 %v449
    %626 = vmatpush2.msra.mxu0 %v448
    %627 = vmatprep.subr.mxu0 %v437
    %628 = vmatpush2.msra.mxu0 %v436
    %629 = vmatprep.subr.mxu0 %v425
    %630 = vmatpush2.msra.mxu0 %v424
    %631 = vmatprep.subr.mxu0 %v413
    %632 = vmatpush2.msra.mxu0 %v412
    %633 = vmatprep.subr.mxu0 %v401
    %634 = vmatpush2.msra.mxu0 %v400
    %635 = vmatprep.subr.mxu0 %v389
    %636 = vmatpush2.msra.mxu0 %v388
    %637 = vmatprep.subr.mxu0 %v377
    %638 = vmatpush2.msra.mxu0 %v376
    %639 = vmatprep.subr.mxu0 %v365
    %640 = vmatpush2.msra.mxu0 %v364
    %641 = vmatprep.subr.mxu0 %v353
    %642 = vmatpush2.msra.mxu0 %v352
    %643 = vmatprep.subr.mxu0 %v341
    %644 = vmatpush2.msra.mxu0 %v340
    %645 = vmatprep.subr.mxu0 %v329
    %646 = vmatpush2.msra.mxu0 %v328
    %647 = vmatprep.subr.mxu0 %v317
    %648 = vmatpush2.msra.mxu0 %v316
    %649 = vmatprep.subr.mxu0 %v305
    %650 = vmatpush2.msra.mxu0 %v304
    %651 = vmatprep.subr.mxu0 %v293
    %652 = vmatpush2.msra.mxu0 %v292
    %653 = vmatprep.mubr.f32.mxu0 %v85
    %654 = vmatmul.mubr.f32.gmra.mxu0 %v84
    %v655 = vpop.f32.mrf.mxu0
    %v656 = vadd.f32 0.0, %v655
    %v657 = vpop.f32.mrf.mxu0
    %v658 = vadd.f32 0.0, %v657
    %659 = vmatprep.mubr.f32.mxu0 %v87
    %660 = vmatmul.mubr.f32.gmra.mxu0 %v86
    %v661 = vpop.f32.mrf.mxu0
    %v662 = vadd.f32 0.0, %v661
    %v663 = vpop.f32.mrf.mxu0
    %v664 = vadd.f32 0.0, %v663
    %665 = vmatprep.mubr.f32.mxu0 %v89
    %666 = vmatmul.mubr.f32.gmra.mxu0 %v88
    %v667 = vpop.f32.mrf.mxu0
    %v668 = vadd.f32 0.0, %v667
    %v669 = vpop.f32.mrf.mxu0
    %v670 = vadd.f32 0.0, %v669
    %671 = vmatprep.mubr.f32.mxu0 %v91
    %672 = vmatmul.mubr.f32.gmra.mxu0 %v90
    %v673 = vpop.f32.mrf.mxu0
    %v674 = vadd.f32 0.0, %v673
    %v675 = vpop.f32.mrf.mxu0
    %v676 = vadd.f32 0.0, %v675
    %677 = vmatprep.mubr.f32.mxu0 %v93
    %678 = vmatmul.mubr.f32.gmra.mxu0 %v92
    %v679 = vpop.f32.mrf.mxu0
    %v680 = vadd.f32 0.0, %v679
    %v681 = vpop.f32.mrf.mxu0
    %v682 = vadd.f32 0.0, %v681
    %683 = vmatprep.mubr.f32.mxu0 %v95
    %684 = vmatmul.mubr.f32.gmra.mxu0 %v94
    %v685 = vpop.f32.mrf.mxu0
    %v686 = vadd.f32 0.0, %v685
    %v687 = vpop.f32.mrf.mxu0
    %v688 = vadd.f32 0.0, %v687
    %689 = vmatprep.mubr.f32.mxu0 %v97
    %690 = vmatmul.mubr.f32.gmra.mxu0 %v96
    %v691 = vpop.f32.mrf.mxu0
    %v692 = vadd.f32 0.0, %v691
    %v693 = vpop.f32.mrf.mxu0
    %v694 = vadd.f32 0.0, %v693
    %695 = vdwg.mxu0
    %696 = vmatprep.subr.mxu0 %v283
    %697 = vmatpush1.msra.mxu0 %v282
    %698 = vmatprep.subr.mxu0 %v271
    %699 = vmatpush1.msra.mxu0 %v270
    %700 = vmatprep.subr.mxu0 %v259
    %701 = vmatpush1.msra.mxu0 %v258
    %702 = vmatprep.subr.mxu0 %v247
    %703 = vmatpush1.msra.mxu0 %v246
    %704 = vmatprep.subr.mxu0 %v235
    %705 = vmatpush1.msra.mxu0 %v234
    %706 = vmatprep.subr.mxu0 %v223
    %707 = vmatpush1.msra.mxu0 %v222
    %708 = vmatprep.subr.mxu0 %v211
    %709 = vmatpush1.msra.mxu0 %v210
    %710 = vmatprep.subr.mxu0 %v199
    %711 = vmatpush1.msra.mxu0 %v198
    %712 = vmatprep.subr.mxu0 %v187
    %713 = vmatpush1.msra.mxu0 %v186
    %714 = vmatprep.subr.mxu0 %v175
    %715 = vmatpush1.msra.mxu0 %v174
    %716 = vmatprep.subr.mxu0 %v163
    %717 = vmatpush1.msra.mxu0 %v162
    %718 = vmatprep.subr.mxu0 %v151
    %719 = vmatpush1.msra.mxu0 %v150
    %720 = vmatprep.subr.mxu0 %v139
    %721 = vmatpush1.msra.mxu0 %v138
    %722 = vmatprep.subr.mxu0 %v127
    %723 = vmatpush1.msra.mxu0 %v126
    %724 = vmatprep.subr.mxu0 %v115
    %725 = vmatpush1.msra.mxu0 %v114
    %726 = vmatprep.subr.mxu0 %v103
    %727 = vmatpush1.msra.mxu0 %v102
    %728 = vmatprep.subr.mxu0 %v475
    %729 = vmatpush2.msra.mxu0 %v474
    %730 = vmatprep.subr.mxu0 %v463
    %731 = vmatpush2.msra.mxu0 %v462
    %732 = vmatprep.subr.mxu0 %v451
    %733 = vmatpush2.msra.mxu0 %v450
    %734 = vmatprep.subr.mxu0 %v439
    %735 = vmatpush2.msra.mxu0 %v438
    %736 = vmatprep.subr.mxu0 %v427
    %737 = vmatpush2.msra.mxu0 %v426
    %738 = vmatprep.subr.mxu0 %v415
    %739 = vmatpush2.msra.mxu0 %v414
    %740 = vmatprep.subr.mxu0 %v403
    %741 = vmatpush2.msra.mxu0 %v402
    %742 = vmatprep.subr.mxu0 %v391
    %743 = vmatpush2.msra.mxu0 %v390
    %744 = vmatprep.subr.mxu0 %v379
    %745 = vmatpush2.msra.mxu0 %v378
    %746 = vmatprep.subr.mxu0 %v367
    %747 = vmatpush2.msra.mxu0 %v366
    %748 = vmatprep.subr.mxu0 %v355
    %749 = vmatpush2.msra.mxu0 %v354
    %750 = vmatprep.subr.mxu0 %v343
    %751 = vmatpush2.msra.mxu0 %v342
    %752 = vmatprep.subr.mxu0 %v331
    %753 = vmatpush2.msra.mxu0 %v330
    %754 = vmatprep.subr.mxu0 %v319
    %755 = vmatpush2.msra.mxu0 %v318
    %756 = vmatprep.subr.mxu0 %v307
    %757 = vmatpush2.msra.mxu0 %v306
    %758 = vmatprep.subr.mxu0 %v295
    %759 = vmatpush2.msra.mxu0 %v294
    %760 = vmatprep.mubr.f32.mxu0 %v85
    %761 = vmatmul.mubr.f32.gmra.mxu0 %v84
    %v762 = vpop.f32.mrf.mxu0
    %v763 = vadd.f32 0.0, %v762
    %v764 = vpop.f32.mrf.mxu0
    %v765 = vadd.f32 0.0, %v764
    %766 = vmatprep.mubr.f32.mxu0 %v87
    %767 = vmatmul.mubr.f32.gmra.mxu0 %v86
    %v768 = vpop.f32.mrf.mxu0
    %v769 = vadd.f32 0.0, %v768
    %v770 = vpop.f32.mrf.mxu0
    %v771 = vadd.f32 0.0, %v770
    %772 = vmatprep.mubr.f32.mxu0 %v89
    %773 = vmatmul.mubr.f32.gmra.mxu0 %v88
    %v774 = vpop.f32.mrf.mxu0
    %v775 = vadd.f32 0.0, %v774
    %v776 = vpop.f32.mrf.mxu0
    %v777 = vadd.f32 0.0, %v776
    %778 = vmatprep.mubr.f32.mxu0 %v91
    %779 = vmatmul.mubr.f32.gmra.mxu0 %v90
    %v780 = vpop.f32.mrf.mxu0
    %v781 = vadd.f32 0.0, %v780
    %v782 = vpop.f32.mrf.mxu0
    %v783 = vadd.f32 0.0, %v782
    %784 = vmatprep.mubr.f32.mxu0 %v93
    %785 = vmatmul.mubr.f32.gmra.mxu0 %v92
    %v786 = vpop.f32.mrf.mxu0
    %v787 = vadd.f32 0.0, %v786
    %v788 = vpop.f32.mrf.mxu0
    %v789 = vadd.f32 0.0, %v788
    %790 = vmatprep.mubr.f32.mxu0 %v95
    %791 = vmatmul.mubr.f32.gmra.mxu0 %v94
    %v792 = vpop.f32.mrf.mxu0
    %v793 = vadd.f32 0.0, %v792
    %v794 = vpop.f32.mrf.mxu0
    %v795 = vadd.f32 0.0, %v794
    %796 = vmatprep.mubr.f32.mxu0 %v97
    %797 = vmatmul.mubr.f32.gmra.mxu0 %v96
    %v798 = vpop.f32.mrf.mxu0
    %v799 = vadd.f32 0.0, %v798
    %v800 = vpop.f32.mrf.mxu0
    %v801 = vadd.f32 0.0, %v800
    %802 = vdwg.mxu0
    %803 = vmatprep.subr.mxu0 %v285
    %804 = vmatpush1.msra.mxu0 %v284
    %805 = vmatprep.subr.mxu0 %v273
    %806 = vmatpush1.msra.mxu0 %v272
    %807 = vmatprep.subr.mxu0 %v261
    %808 = vmatpush1.msra.mxu0 %v260
    %809 = vmatprep.subr.mxu0 %v249
    %810 = vmatpush1.msra.mxu0 %v248
    %811 = vmatprep.subr.mxu0 %v237
    %812 = vmatpush1.msra.mxu0 %v236
    %813 = vmatprep.subr.mxu0 %v225
    %814 = vmatpush1.msra.mxu0 %v224
    %815 = vmatprep.subr.mxu0 %v213
    %816 = vmatpush1.msra.mxu0 %v212
    %817 = vmatprep.subr.mxu0 %v201
    %818 = vmatpush1.msra.mxu0 %v200
    %819 = vmatprep.subr.mxu0 %v189
    %820 = vmatpush1.msra.mxu0 %v188
    %821 = vmatprep.subr.mxu0 %v177
    %822 = vmatpush1.msra.mxu0 %v176
    %823 = vmatprep.subr.mxu0 %v165
    %824 = vmatpush1.msra.mxu0 %v164
    %825 = vmatprep.subr.mxu0 %v153
    %826 = vmatpush1.msra.mxu0 %v152
    %827 = vmatprep.subr.mxu0 %v141
    %828 = vmatpush1.msra.mxu0 %v140
    %829 = vmatprep.subr.mxu0 %v129
    %830 = vmatpush1.msra.mxu0 %v128
    %831 = vmatprep.subr.mxu0 %v117
    %832 = vmatpush1.msra.mxu0 %v116
    %833 = vmatprep.subr.mxu0 %v105
    %834 = vmatpush1.msra.mxu0 %v104
    %835 = vmatprep.subr.mxu0 %v477
    %836 = vmatpush2.msra.mxu0 %v476
    %837 = vmatprep.subr.mxu0 %v465
    %838 = vmatpush2.msra.mxu0 %v464
    %839 = vmatprep.subr.mxu0 %v453
    %840 = vmatpush2.msra.mxu0 %v452
    %841 = vmatprep.subr.mxu0 %v441
    %842 = vmatpush2.msra.mxu0 %v440
    %843 = vmatprep.subr.mxu0 %v429
    %844 = vmatpush2.msra.mxu0 %v428
    %845 = vmatprep.subr.mxu0 %v417
    %846 = vmatpush2.msra.mxu0 %v416
    %847 = vmatprep.subr.mxu0 %v405
    %848 = vmatpush2.msra.mxu0 %v404
    %849 = vmatprep.subr.mxu0 %v393
    %850 = vmatpush2.msra.mxu0 %v392
    %851 = vmatprep.subr.mxu0 %v381
    %852 = vmatpush2.msra.mxu0 %v380
    %853 = vmatprep.subr.mxu0 %v369
    %854 = vmatpush2.msra.mxu0 %v368
    %855 = vmatprep.subr.mxu0 %v357
    %856 = vmatpush2.msra.mxu0 %v356
    %857 = vmatprep.subr.mxu0 %v345
    %858 = vmatpush2.msra.mxu0 %v344
    %859 = vmatprep.subr.mxu0 %v333
    %860 = vmatpush2.msra.mxu0 %v332
    %861 = vmatprep.subr.mxu0 %v321
    %862 = vmatpush2.msra.mxu0 %v320
    %863 = vmatprep.subr.mxu0 %v309
    %864 = vmatpush2.msra.mxu0 %v308
    %865 = vmatprep.subr.mxu0 %v297
    %866 = vmatpush2.msra.mxu0 %v296
    %867 = vmatprep.mubr.f32.mxu0 %v85
    %868 = vmatmul.mubr.f32.gmra.mxu0 %v84
    %v869 = vpop.f32.mrf.mxu0
    %v870 = vadd.f32 0.0, %v869
    %v871 = vpop.f32.mrf.mxu0
    %v872 = vadd.f32 0.0, %v871
    %873 = vmatprep.mubr.f32.mxu0 %v87
    %874 = vmatmul.mubr.f32.gmra.mxu0 %v86
    %v875 = vpop.f32.mrf.mxu0
    %v876 = vadd.f32 0.0, %v875
    %v877 = vpop.f32.mrf.mxu0
    %v878 = vadd.f32 0.0, %v877
    %879 = vmatprep.mubr.f32.mxu0 %v89
    %880 = vmatmul.mubr.f32.gmra.mxu0 %v88
    %v881 = vpop.f32.mrf.mxu0
    %v882 = vadd.f32 0.0, %v881
    %v883 = vpop.f32.mrf.mxu0
    %v884 = vadd.f32 0.0, %v883
    %885 = vmatprep.mubr.f32.mxu0 %v91
    %886 = vmatmul.mubr.f32.gmra.mxu0 %v90
    %v887 = vpop.f32.mrf.mxu0
    %v888 = vadd.f32 0.0, %v887
    %v889 = vpop.f32.mrf.mxu0
    %v890 = vadd.f32 0.0, %v889
    %891 = vmatprep.mubr.f32.mxu0 %v93
    %892 = vmatmul.mubr.f32.gmra.mxu0 %v92
    %v893 = vpop.f32.mrf.mxu0
    %v894 = vadd.f32 0.0, %v893
    %v895 = vpop.f32.mrf.mxu0
    %v896 = vadd.f32 0.0, %v895
    %897 = vmatprep.mubr.f32.mxu0 %v95
    %898 = vmatmul.mubr.f32.gmra.mxu0 %v94
    %v899 = vpop.f32.mrf.mxu0
    %v900 = vadd.f32 0.0, %v899
    %v901 = vpop.f32.mrf.mxu0
    %v902 = vadd.f32 0.0, %v901
    %903 = vmatprep.mubr.f32.mxu0 %v97
    %904 = vmatmul.mubr.f32.gmra.mxu0 %v96
    %v905 = vpop.f32.mrf.mxu0
    %v906 = vadd.f32 0.0, %v905
    %v907 = vpop.f32.mrf.mxu0
    %v908 = vadd.f32 0.0, %v907
    %909 = vdwg.mxu0
    %910 = vmatprep.subr.mxu0 %v287
    %911 = vmatpush1.msra.mxu0 %v286
    %912 = vmatprep.subr.mxu0 %v275
    %913 = vmatpush1.msra.mxu0 %v274
    %914 = vmatprep.subr.mxu0 %v263
    %915 = vmatpush1.msra.mxu0 %v262
    %916 = vmatprep.subr.mxu0 %v251
    %917 = vmatpush1.msra.mxu0 %v250
    %918 = vmatprep.subr.mxu0 %v239
    %919 = vmatpush1.msra.mxu0 %v238
    %920 = vmatprep.subr.mxu0 %v227
    %921 = vmatpush1.msra.mxu0 %v226
    %922 = vmatprep.subr.mxu0 %v215
    %923 = vmatpush1.msra.mxu0 %v214
    %924 = vmatprep.subr.mxu0 %v203
    %925 = vmatpush1.msra.mxu0 %v202
    %926 = vmatprep.subr.mxu0 %v191
    %927 = vmatpush1.msra.mxu0 %v190
    %928 = vmatprep.subr.mxu0 %v179
    %929 = vmatpush1.msra.mxu0 %v178
    %930 = vmatprep.subr.mxu0 %v167
    %931 = vmatpush1.msra.mxu0 %v166
    %932 = vmatprep.subr.mxu0 %v155
    %933 = vmatpush1.msra.mxu0 %v154
    %934 = vmatprep.subr.mxu0 %v143
    %935 = vmatpush1.msra.mxu0 %v142
    %936 = vmatprep.subr.mxu0 %v131
    %937 = vmatpush1.msra.mxu0 %v130
    %938 = vmatprep.subr.mxu0 %v119
    %939 = vmatpush1.msra.mxu0 %v118
    %940 = vmatprep.subr.mxu0 %v107
    %941 = vmatpush1.msra.mxu0 %v106
    %942 = vmatprep.subr.mxu0 %v479
    %943 = vmatpush2.msra.mxu0 %v478
    %944 = vmatprep.subr.mxu0 %v467
    %945 = vmatpush2.msra.mxu0 %v466
    %946 = vmatprep.subr.mxu0 %v455
    %947 = vmatpush2.msra.mxu0 %v454
    %948 = vmatprep.subr.mxu0 %v443
    %949 = vmatpush2.msra.mxu0 %v442
    %950 = vmatprep.subr.mxu0 %v431
    %951 = vmatpush2.msra.mxu0 %v430
    %952 = vmatprep.subr.mxu0 %v419
    %953 = vmatpush2.msra.mxu0 %v418
    %954 = vmatprep.subr.mxu0 %v407
    %955 = vmatpush2.msra.mxu0 %v406
    %956 = vmatprep.subr.mxu0 %v395
    %957 = vmatpush2.msra.mxu0 %v394
    %958 = vmatprep.subr.mxu0 %v383
    %959 = vmatpush2.msra.mxu0 %v382
    %960 = vmatprep.subr.mxu0 %v371
    %961 = vmatpush2.msra.mxu0 %v370
    %962 = vmatprep.subr.mxu0 %v359
    %963 = vmatpush2.msra.mxu0 %v358
    %964 = vmatprep.subr.mxu0 %v347
    %965 = vmatpush2.msra.mxu0 %v346
    %966 = vmatprep.subr.mxu0 %v335
    %967 = vmatpush2.msra.mxu0 %v334
    %968 = vmatprep.subr.mxu0 %v323
    %969 = vmatpush2.msra.mxu0 %v322
    %970 = vmatprep.subr.mxu0 %v311
    %971 = vmatpush2.msra.mxu0 %v310
    %972 = vmatprep.subr.mxu0 %v299
    %973 = vmatpush2.msra.mxu0 %v298
    %974 = vmatprep.mubr.f32.mxu0 %v85
    %975 = vmatmul.mubr.f32.gmra.mxu0 %v84
    %v976 = vpop.f32.mrf.mxu0
    %v977 = vadd.f32 0.0, %v976
    %v978 = vpop.f32.mrf.mxu0
    %v979 = vadd.f32 0.0, %v978
    %980 = vmatprep.mubr.f32.mxu0 %v87
    %981 = vmatmul.mubr.f32.gmra.mxu0 %v86
    %v982 = vpop.f32.mrf.mxu0
    %v983 = vadd.f32 0.0, %v982
    %v984 = vpop.f32.mrf.mxu0
    %v985 = vadd.f32 0.0, %v984
    %986 = vmatprep.mubr.f32.mxu0 %v89
    %987 = vmatmul.mubr.f32.gmra.mxu0 %v88
    %v988 = vpop.f32.mrf.mxu0
    %v989 = vadd.f32 0.0, %v988
    %v990 = vpop.f32.mrf.mxu0
    %v991 = vadd.f32 0.0, %v990
    %992 = vmatprep.mubr.f32.mxu0 %v91
    %993 = vmatmul.mubr.f32.gmra.mxu0 %v90
    %v994 = vpop.f32.mrf.mxu0
    %v995 = vadd.f32 0.0, %v994
    %v996 = vpop.f32.mrf.mxu0
    %v997 = vadd.f32 0.0, %v996
    %998 = vmatprep.mubr.f32.mxu0 %v93
    %999 = vmatmul.mubr.f32.gmra.mxu0 %v92
    %v1000 = vpop.f32.mrf.mxu0
    %v1001 = vadd.f32 0.0, %v1000
    %v1002 = vpop.f32.mrf.mxu0
    %v1003 = vadd.f32 0.0, %v1002
    %1004 = vmatprep.mubr.f32.mxu0 %v95
    %1005 = vmatmul.mubr.f32.gmra.mxu0 %v94
    %v1006 = vpop.f32.mrf.mxu0
    %v1007 = vadd.f32 0.0, %v1006
    %v1008 = vpop.f32.mrf.mxu0
    %v1009 = vadd.f32 0.0, %v1008
    %1010 = vmatprep.mubr.f32.mxu0 %v97
    %1011 = vmatmul.mubr.f32.gmra.mxu0 %v96
    %v1012 = vpop.f32.mrf.mxu0
    %v1013 = vadd.f32 0.0, %v1012
    %v1014 = vpop.f32.mrf.mxu0
    %v1015 = vadd.f32 0.0, %v1014
    %1016 = vdwg.mxu0
    %1017 = vmatprep.subr.mxu0 %v289
    %1018 = vmatpush1.msra.mxu0 %v288
    %1019 = vmatprep.subr.mxu0 %v277
    %1020 = vmatpush1.msra.mxu0 %v276
    %1021 = vmatprep.subr.mxu0 %v265
    %1022 = vmatpush1.msra.mxu0 %v264
    %1023 = vmatprep.subr.mxu0 %v253
    %1024 = vmatpush1.msra.mxu0 %v252
    %1025 = vmatprep.subr.mxu0 %v241
    %1026 = vmatpush1.msra.mxu0 %v240
    %1027 = vmatprep.subr.mxu0 %v229
    %1028 = vmatpush1.msra.mxu0 %v228
    %1029 = vmatprep.subr.mxu0 %v217
    %1030 = vmatpush1.msra.mxu0 %v216
    %1031 = vmatprep.subr.mxu0 %v205
    %1032 = vmatpush1.msra.mxu0 %v204
    %1033 = vmatprep.subr.mxu0 %v193
    %1034 = vmatpush1.msra.mxu0 %v192
    %1035 = vmatprep.subr.mxu0 %v181
    %1036 = vmatpush1.msra.mxu0 %v180
    %1037 = vmatprep.subr.mxu0 %v169
    %1038 = vmatpush1.msra.mxu0 %v168
    %1039 = vmatprep.subr.mxu0 %v157
    %1040 = vmatpush1.msra.mxu0 %v156
    %1041 = vmatprep.subr.mxu0 %v145
    %1042 = vmatpush1.msra.mxu0 %v144
    %1043 = vmatprep.subr.mxu0 %v133
    %1044 = vmatpush1.msra.mxu0 %v132
    %1045 = vmatprep.subr.mxu0 %v121
    %1046 = vmatpush1.msra.mxu0 %v120
    %1047 = vmatprep.subr.mxu0 %v109
    %1048 = vmatpush1.msra.mxu0 %v108
    %1049 = vmatprep.subr.mxu0 %v481
    %1050 = vmatpush2.msra.mxu0 %v480
    %1051 = vmatprep.subr.mxu0 %v469
    %1052 = vmatpush2.msra.mxu0 %v468
    %1053 = vmatprep.subr.mxu0 %v457
    %1054 = vmatpush2.msra.mxu0 %v456
    %1055 = vmatprep.subr.mxu0 %v445
    %1056 = vmatpush2.msra.mxu0 %v444
    %1057 = vmatprep.subr.mxu0 %v433
    %1058 = vmatpush2.msra.mxu0 %v432
    %1059 = vmatprep.subr.mxu0 %v421
    %1060 = vmatpush2.msra.mxu0 %v420
    %1061 = vmatprep.subr.mxu0 %v409
    %1062 = vmatpush2.msra.mxu0 %v408
    %1063 = vmatprep.subr.mxu0 %v397
    %1064 = vmatpush2.msra.mxu0 %v396
    %1065 = vmatprep.subr.mxu0 %v385
    %1066 = vmatpush2.msra.mxu0 %v384
    %1067 = vmatprep.subr.mxu0 %v373
    %1068 = vmatpush2.msra.mxu0 %v372
    %1069 = vmatprep.subr.mxu0 %v361
    %1070 = vmatpush2.msra.mxu0 %v360
    %1071 = vmatprep.subr.mxu0 %v349
    %1072 = vmatpush2.msra.mxu0 %v348
    %1073 = vmatprep.subr.mxu0 %v337
    %1074 = vmatpush2.msra.mxu0 %v336
    %1075 = vmatprep.subr.mxu0 %v325
    %1076 = vmatpush2.msra.mxu0 %v324
    %1077 = vmatprep.subr.mxu0 %v313
    %1078 = vmatpush2.msra.mxu0 %v312
    %1079 = vmatprep.subr.mxu0 %v301
    %1080 = vmatpush2.msra.mxu0 %v300
    %1081 = vmatprep.mubr.f32.mxu0 %v85
    %1082 = vmatmul.mubr.f32.gmra.mxu0 %v84
    %v1083 = vpop.f32.mrf.mxu0
    %v1084 = vadd.f32 0.0, %v1083
    %v1085 = vpop.f32.mrf.mxu0
    %v1086 = vadd.f32 0.0, %v1085
    %1087 = vmatprep.mubr.f32.mxu0 %v87
    %1088 = vmatmul.mubr.f32.gmra.mxu0 %v86
    %v1089 = vpop.f32.mrf.mxu0
    %v1090 = vadd.f32 0.0, %v1089
    %v1091 = vpop.f32.mrf.mxu0
    %v1092 = vadd.f32 0.0, %v1091
    %1093 = vmatprep.mubr.f32.mxu0 %v89
    %1094 = vmatmul.mubr.f32.gmra.mxu0 %v88
    %v1095 = vpop.f32.mrf.mxu0
    %v1096 = vadd.f32 0.0, %v1095
    %v1097 = vpop.f32.mrf.mxu0
    %v1098 = vadd.f32 0.0, %v1097
    %1099 = vmatprep.mubr.f32.mxu0 %v91
    %1100 = vmatmul.mubr.f32.gmra.mxu0 %v90
    %v1101 = vpop.f32.mrf.mxu0
    %v1102 = vadd.f32 0.0, %v1101
    %v1103 = vpop.f32.mrf.mxu0
    %v1104 = vadd.f32 0.0, %v1103
    %1105 = vmatprep.mubr.f32.mxu0 %v93
    %1106 = vmatmul.mubr.f32.gmra.mxu0 %v92
    %v1107 = vpop.f32.mrf.mxu0
    %v1108 = vadd.f32 0.0, %v1107
    %v1109 = vpop.f32.mrf.mxu0
    %v1110 = vadd.f32 0.0, %v1109
    %1111 = vmatprep.mubr.f32.mxu0 %v95
    %1112 = vmatmul.mubr.f32.gmra.mxu0 %v94
    %v1113 = vpop.f32.mrf.mxu0
    %v1114 = vadd.f32 0.0, %v1113
    %v1115 = vpop.f32.mrf.mxu0
    %v1116 = vadd.f32 0.0, %v1115
    %1117 = vmatprep.mubr.f32.mxu0 %v97
    %1118 = vmatmul.mubr.f32.gmra.mxu0 %v96
    %v1119 = vpop.f32.mrf.mxu0
    %v1120 = vadd.f32 0.0, %v1119
    %v1121 = vpop.f32.mrf.mxu0
    %v1122 = vadd.f32 0.0, %v1121
    %1123 = vdwg.mxu0
    %1124 = vst [vmem:[#allocation8] sm:$0xff] %v549
    %1125 = vst [vmem:[#allocation8 + $0x8] sm:$0xff] %v551
    %1126 = vst [vmem:[#allocation8 + $0x10] sm:$0xff] %v656
    %1127 = vst [vmem:[#allocation8 + $0x18] sm:$0xff] %v658
    %1128 = vst [vmem:[#allocation8 + $0x20] sm:$0xff] %v763
    %1129 = vst [vmem:[#allocation8 + $0x28] sm:$0xff] %v765
    %1130 = vst [vmem:[#allocation8 + $0x30] sm:$0xff] %v870
    %1131 = vst [vmem:[#allocation8 + $0x38] sm:$0xff] %v872
    %1132 = vst [vmem:[#allocation8 + $0x40] sm:$0xff] %v977
    %1133 = vst [vmem:[#allocation8 + $0x48] sm:$0xff] %v979
    %1134 = vst [vmem:[#allocation8 + $0x50] sm:$0xff] %v1084
    %1135 = vst [vmem:[#allocation8 + $0x58] sm:$0xff] %v1086
    %1136 = vst [vmem:[#allocation8 + $0x60] sm:$0xff] %v555
    %1137 = vst [vmem:[#allocation8 + $0x68] sm:$0xff] %v557
    %1138 = vst [vmem:[#allocation8 + $0x70] sm:$0xff] %v662
    %1139 = vst [vmem:[#allocation8 + $0x78] sm:$0xff] %v664
    %1140 = vst [vmem:[#allocation8 + $0x80] sm:$0xff] %v769
    %1141 = vst [vmem:[#allocation8 + $0x88] sm:$0xff] %v771
    %1142 = vst [vmem:[#allocation8 + $0x90] sm:$0xff] %v876
    %1143 = vst [vmem:[#allocation8 + $0x98] sm:$0xff] %v878
    %1144 = vst [vmem:[#allocation8 + $0xa0] sm:$0xff] %v983
    %1145 = vst [vmem:[#allocation8 + $0xa8] sm:$0xff] %v985
    %1146 = vst [vmem:[#allocation8 + $0xb0] sm:$0xff] %v1090
    %1147 = vst [vmem:[#allocation8 + $0xb8] sm:$0xff] %v1092
    %1148 = vst [vmem:[#allocation8 + $0xc0] sm:$0xff] %v561
    %1149 = vst [vmem:[#allocation8 + $0xc8] sm:$0xff] %v563
    %1150 = vst [vmem:[#allocation8 + $0xd0] sm:$0xff] %v668
    %1151 = vst [vmem:[#allocation8 + $0xd8] sm:$0xff] %v670
    %1152 = vst [vmem:[#allocation8 + $0xe0] sm:$0xff] %v775
    %1153 = vst [vmem:[#allocation8 + $0xe8] sm:$0xff] %v777
    %1154 = vst [vmem:[#allocation8 + $0xf0] sm:$0xff] %v882
    %1155 = vst [vmem:[#allocation8 + $0xf8] sm:$0xff] %v884
    %1156 = vst [vmem:[#allocation8 + $0x100] sm:$0xff] %v989
    %1157 = vst [vmem:[#allocation8 + $0x108] sm:$0xff] %v991
    %1158 = vst [vmem:[#allocation8 + $0x110] sm:$0xff] %v1096
    %1159 = vst [vmem:[#allocation8 + $0x118] sm:$0xff] %v1098
    %1160 = vst [vmem:[#allocation8 + $0x120] sm:$0xff] %v567
    %1161 = vst [vmem:[#allocation8 + $0x128] sm:$0xff] %v569
    %1162 = vst [vmem:[#allocation8 + $0x130] sm:$0xff] %v674
    %1163 = vst [vmem:[#allocation8 + $0x138] sm:$0xff] %v676
    %1164 = vst [vmem:[#allocation8 + $0x140] sm:$0xff] %v781
    %1165 = vst [vmem:[#allocation8 + $0x148] sm:$0xff] %v783
    %1166 = vst [vmem:[#allocation8 + $0x150] sm:$0xff] %v888
    %1167 = vst [vmem:[#allocation8 + $0x158] sm:$0xff] %v890
    %1168 = vst [vmem:[#allocation8 + $0x160] sm:$0xff] %v995
    %1169 = vst [vmem:[#allocation8 + $0x168] sm:$0xff] %v997
    %1170 = vst [vmem:[#allocation8 + $0x170] sm:$0xff] %v1102
    %1171 = vst [vmem:[#allocation8 + $0x178] sm:$0xff] %v1104
    %1172 = vst [vmem:[#allocation8 + $0x180] sm:$0xff] %v573
    %1173 = vst [vmem:[#allocation8 + $0x188] sm:$0xff] %v575
    %1174 = vst [vmem:[#allocation8 + $0x190] sm:$0xff] %v680
    %1175 = vst [vmem:[#allocation8 + $0x198] sm:$0xff] %v682
    %1176 = vst [vmem:[#allocation8 + $0x1a0] sm:$0xff] %v787
    %1177 = vst [vmem:[#allocation8 + $0x1a8] sm:$0xff] %v789
    %1178 = vst [vmem:[#allocation8 + $0x1b0] sm:$0xff] %v894
    %1179 = vst [vmem:[#allocation8 + $0x1b8] sm:$0xff] %v896
    %1180 = vst [vmem:[#allocation8 + $0x1c0] sm:$0xff] %v1001
    %1181 = vst [vmem:[#allocation8 + $0x1c8] sm:$0xff] %v1003
    %1182 = vst [vmem:[#allocation8 + $0x1d0] sm:$0xff] %v1108
    %1183 = vst [vmem:[#allocation8 + $0x1d8] sm:$0xff] %v1110
    %1184 = vst [vmem:[#allocation8 + $0x1e0] sm:$0xff] %v579
    %1185 = vst [vmem:[#allocation8 + $0x1e8] sm:$0xff] %v581
    %1186 = vst [vmem:[#allocation8 + $0x1f0] sm:$0xff] %v686
    %1187 = vst [vmem:[#allocation8 + $0x1f8] sm:$0xff] %v688
    %1188 = vst [vmem:[#allocation8 + $0x200] sm:$0xff] %v793
    %1189 = vst [vmem:[#allocation8 + $0x208] sm:$0xff] %v795
    %1190 = vst [vmem:[#allocation8 + $0x210] sm:$0xff] %v900
    %1191 = vst [vmem:[#allocation8 + $0x218] sm:$0xff] %v902
    %1192 = vst [vmem:[#allocation8 + $0x220] sm:$0xff] %v1007
    %1193 = vst [vmem:[#allocation8 + $0x228] sm:$0xff] %v1009
    %1194 = vst [vmem:[#allocation8 + $0x230] sm:$0xff] %v1114
    %1195 = vst [vmem:[#allocation8 + $0x238] sm:$0xff] %v1116
    %1196 = vst [vmem:[#allocation8 + $0x240] sm:$0x1] %v585
    %1197 = vst [vmem:[#allocation8 + $0x248] sm:$0x1] %v587
    %1198 = vst [vmem:[#allocation8 + $0x250] sm:$0x1] %v692
    %1199 = vst [vmem:[#allocation8 + $0x258] sm:$0x1] %v694
    %1200 = vst [vmem:[#allocation8 + $0x260] sm:$0x1] %v799
    %1201 = vst [vmem:[#allocation8 + $0x268] sm:$0x1] %v801
    %1202 = vst [vmem:[#allocation8 + $0x270] sm:$0x1] %v906
    %1203 = vst [vmem:[#allocation8 + $0x278] sm:$0x1] %v908
    %1204 = vst [vmem:[#allocation8 + $0x280] sm:$0x1] %v1013
    %1205 = vst [vmem:[#allocation8 + $0x288] sm:$0x1] %v1015
    %1206 = vst [vmem:[#allocation8 + $0x290] sm:$0x1] %v1120
    %1207 = vst [vmem:[#allocation8 + $0x298] sm:$0x1] %v1122
    // Predicated region
    $region26: #{tpu_custom_call.1} parent=1 // pred_check
      _
    $region27: #{tpu_custom_call.1} parent=1 // pred_check_branch
      %1209 = sbr.rel (0) target = $region29
    $region28: #{tpu_custom_call.1} parent=1 // pred_region
      %s1211 = ssub.s32 10752, 10752
      %1212 = vsyncadd [#allocation4], %s1211
      %s1213 = sshll.u32 [#allocation8], 4
      %s1214 = int_to_ptr.vmem [resolvable:$true] %s1213
      %1219 = dma.vmem_to_hbm [thread:$0]  %s1214, 10752, %s3, [#allocation4], 1536, 1536, 96
    $region29: #{tpu_custom_call.1} parent=1 // pred_fallthru
      _
    // Predicated region
    $region30: #{tpu_custom_call.1} parent=1 // pred_check
      _
    $region31: #{tpu_custom_call.1} parent=1 // pred_check_branch
      %1221 = sbr.rel (0) target = $region33
    $region32: #{tpu_custom_call.1} parent=1 // pred_region
      %1222 = dma.done [#allocation4], 10752
    $region33: #{tpu_custom_call.1} parent=1 // pred_fallthru
      _
    %1223 = vsyncpa [#allocation3], 1
    %1224 = vsyncpa [#allocation6], 1
    %1225 = vsyncpa [#allocation4], 1

</llo_original>
